<compile_context>
chip_gen: v5e
topology: v5e:2x2
jax: 0.10.0
libtpu: 0.0.40
codegen_flags: <defaults>
</compile_context>

<pallas_src>
import jax
import jax.numpy as jnp
from jax.experimental import pallas as pl
from jax.experimental.pallas import tpu as pltpu

_EPS = 1e-6  # torch.nn.PairwiseDistance default eps


def _partials_kernel(y1_ref, y2_ref, d2_ref, rowabs_ref):
    """Per-row streaming partials for one (tb, D) tile.

    d2_ref[r, 0]     = sum_d (y1[r,d] - y2[r,d] + eps)^2
    rowabs_ref[r, 0] = sum_d |y1[r,d]| + sum_d |y2[r,d]|
    """
    y1 = y1_ref[...].astype(jnp.float32)      # (tb, D)
    y2 = y2_ref[...].astype(jnp.float32)      # (tb, D)

    diff = y1 - y2 + _EPS
    d2_ref[...] = jnp.sum(diff * diff, axis=-1, keepdims=True)            # (tb, 1)
    rowabs_ref[...] = (jnp.sum(jnp.abs(y1), axis=-1, keepdims=True)
                       + jnp.sum(jnp.abs(y2), axis=-1, keepdims=True))    # (tb, 1)


def _pick_row_tile(B, D, itemsize):
    """Largest row tile whose double-buffered y1+y2 windows stay well inside the
    smallest scoped-VMEM budget across v5e (16 MiB) / v6e (32 MiB) / v7x (64 MiB phys)."""
    budget = 8 * 1024 * 1024                       # bytes for input buffers (2 in x 2 buf)
    tb = budget // (4 * D * max(int(itemsize), 1))
    tb = int(max(8, min(512, tb)))
    tb -= tb % 8                                   # sublane alignment
    if B <= tb:
        tb = ((B + 7) // 8) * 8                    # single tile covering the padded batch
    return max(tb, 8)


def _streaming_partials(y1, y2):
    """Tiled, pipelined pass over (B, D) inputs -> per-row d2 and per-row L1 partials."""
    B, D = y1.shape
    tb = _pick_row_tile(B, D, y1.dtype.itemsize)

    Bp = ((B + tb - 1) // tb) * tb
    if Bp != B:
        pad = Bp - B
        # Zero padding is semantically neutral: padded rows contribute 0 to the L1
        # sums and their d2 rows are sliced away below.
        y1 = jnp.pad(y1, ((0, pad), (0, 0)))
        y2 = jnp.pad(y2, ((0, pad), (0, 0)))
    grid = (Bp // tb,)

    in_bytes = 2 * Bp * D * y1.dtype.itemsize
    d2, rowabs = pl.pallas_call(
        _partials_kernel,
        out_shape=(
            jax.ShapeDtypeStruct((Bp, 1), jnp.float32),
            jax.ShapeDtypeStruct((Bp, 1), jnp.float32),
        ),
        grid=grid,
        in_specs=[
            pl.BlockSpec((tb, D), lambda i: (i, 0)),
            pl.BlockSpec((tb, D), lambda i: (i, 0)),
        ],
        out_specs=(
            pl.BlockSpec((tb, 1), lambda i: (i, 0)),
            pl.BlockSpec((tb, 1), lambda i: (i, 0)),
        ),
        compiler_params=pltpu.CompilerParams(
            dimension_semantics=("parallel",),
        ),
        cost_estimate=pl.CostEstimate(
            flops=int(8 * Bp * D),
            transcendentals=0,
            bytes_accessed=int(in_bytes + 8 * Bp),
        ),
    )(y1, y2)

    return d2[:B, 0], rowabs[:B, 0]


def contrastive_loss(y1, y2, flag=None):
    """JAX/Pallas equivalent of ContrastiveLoss.forward(y1, y2, flag)."""
    B, _ = y1.shape
    d2, rowabs = _streaming_partials(y1, y2)
    d = jnp.sqrt(d2)                       # (B,) euclidean distance incl. eps

    if flag is None:
        return d

    # O(B) scalar finish in plain JAX (keeps the kernel grid fully parallel).
    m = 0.5 * jnp.sum(rowabs)              # (||y1||_1 + ||y2||_1) / 2
    hinge = jnp.maximum(m - d, 0.0)
    flag = flag.reshape(B).astype(jnp.float32)
    return jnp.mean(flag * d2 + (1.0 - flag) * hinge * hinge)


def _reference(y1, y2, flag):
    """Plain-JAX reference mirroring the PyTorch forward (for sanity check)."""
    y1 = y1.astype(jnp.float32)
    y2 = y2.astype(jnp.float32)
    m = (jnp.sum(jnp.abs(y1)) + jnp.sum(jnp.abs(y2))) * 0.5
    d = jnp.sqrt(jnp.sum((y1 - y2 + _EPS) ** 2, axis=-1))
    if flag is None:
        return d
    flag = flag.astype(jnp.float32)
    return jnp.mean(flag * d**2 + (1.0 - flag) * jnp.maximum(m - d, 0.0) ** 2)


if __name__ == "__main__":
    B, D = 8, 32
    key = jax.random.PRNGKey(0)
    k1, k2, k3 = jax.random.split(key, 3)

    y1 = jax.random.normal(k1, (B, D), dtype=jnp.float32)
    y2 = jax.random.normal(k2, (B, D), dtype=jnp.float32)
    flag = (jax.random.uniform(k3, (B,)) > 0.5).astype(jnp.float32)

    # flag-present path (scalar loss)
    loss = jax.block_until_ready(contrastive_loss(y1, y2, flag))
    ref = _reference(y1, y2, flag)
    assert jnp.allclose(loss, ref, rtol=1e-5, atol=1e-5), (loss, ref)

    # flag=None path (per-row euclidean distance)
    dist = jax.block_until_ready(contrastive_loss(y1, y2, None))
    ref_d = _reference(y1, y2, None)
    assert jnp.allclose(dist, ref_d, rtol=1e-5, atol=1e-5)

    # non-multiple-of-tile batch to exercise the padding path
    B2 = 13
    y1b = jax.random.normal(k1, (B2, D), dtype=jnp.float32)
    y2b = jax.random.normal(k2, (B2, D), dtype=jnp.float32)
    flagb = (jax.random.uniform(k3, (B2,)) > 0.5).astype(jnp.float32)
    lb = jax.block_until_ready(contrastive_loss(y1b, y2b, flagb))
    assert jnp.allclose(lb, _reference(y1b, y2b, flagb), rtol=1e-5, atol=1e-5)

    print("KERNEL_OK")
</pallas_src>

<mosaic_0001>
module attributes {stable_mosaic.version = 11 : i64} {
  func.func @_partials_kernel(%arg0: i32, %arg1: memref<8x32xf32, #tpu.memory_space<vmem>>, %arg2: memref<8x32xf32, #tpu.memory_space<vmem>>, %arg3: memref<8x1xf32, #tpu.memory_space<vmem>>, %arg4: memref<8x1xf32, #tpu.memory_space<vmem>>) attributes {dimension_semantics = [#tpu.dimension_semantics<parallel>], iteration_bounds = array<i64: 1>, scalar_prefetch = 0 : i64, scratch_operands = 0 : i64, tpu.core_type = #tpu.core_type<tc>, window_params = [{transform_indices = @transform_0, window_bounds = array<i64: 8, 32>}, {transform_indices = @transform_1, window_bounds = array<i64: 8, 32>}, {transform_indices = @transform_2, window_bounds = array<i64: 8, 1>}, {transform_indices = @transform_3, window_bounds = array<i64: 8, 1>}]} {
    %c0 = arith.constant 0 : index
    %c0_0 = arith.constant 0 : index
    %0 = vector.load %arg1[%c0, %c0_0] : memref<8x32xf32, #tpu.memory_space<vmem>>, vector<8x32xf32>
    %c0_1 = arith.constant 0 : index
    %c0_2 = arith.constant 0 : index
    %1 = vector.load %arg2[%c0_1, %c0_2] : memref<8x32xf32, #tpu.memory_space<vmem>>, vector<8x32xf32>
    %2 = arith.subf %0, %1 : vector<8x32xf32>
    %cst = arith.constant 9.99999997E-7 : f32
    %3 = vector.broadcast %cst : f32 to vector<8x32xf32>
    %4 = arith.addf %2, %3 : vector<8x32xf32>
    %5 = arith.mulf %4, %4 : vector<8x32xf32>
    %cst_3 = arith.constant dense<0.000000e+00> : vector<8xf32>
    %6 = vector.multi_reduction <add>, %5, %cst_3 [1] : vector<8x32xf32> to vector<8xf32>
    %7 = vector.shape_cast %6 : vector<8xf32> to vector<8x1xf32>
    %c0_4 = arith.constant 0 : index
    %c0_5 = arith.constant 0 : index
    %8 = vector.load %arg3[%c0_4, %c0_5] : memref<8x1xf32, #tpu.memory_space<vmem>>, vector<8x1xf32>
    tpu.vector_store %arg3[%c0_4, %c0_5], %7 {strides = array<i32>} : memref<8x1xf32, #tpu.memory_space<vmem>>, vector<8x1xf32>,
    %9 = math.absf %0 : vector<8x32xf32>
    %cst_6 = arith.constant dense<0.000000e+00> : vector<8xf32>
    %10 = vector.multi_reduction <add>, %9, %cst_6 [1] : vector<8x32xf32> to vector<8xf32>
    %11 = vector.shape_cast %10 : vector<8xf32> to vector<8x1xf32>
    %12 = math.absf %1 : vector<8x32xf32>
    %cst_7 = arith.constant dense<0.000000e+00> : vector<8xf32>
    %13 = vector.multi_reduction <add>, %12, %cst_7 [1] : vector<8x32xf32> to vector<8xf32>
    %14 = vector.shape_cast %13 : vector<8xf32> to vector<8x1xf32>
    %15 = arith.addf %11, %14 : vector<8x1xf32>
    %c0_8 = arith.constant 0 : index
    %c0_9 = arith.constant 0 : index
    %16 = vector.load %arg4[%c0_8, %c0_9] : memref<8x1xf32, #tpu.memory_space<vmem>>, vector<8x1xf32>
    tpu.vector_store %arg4[%c0_8, %c0_9], %15 {strides = array<i32>} : memref<8x1xf32, #tpu.memory_space<vmem>>, vector<8x1xf32>,
    return
  }
  func.func @transform_0(%arg0: i32) -> (i32, i32) {
    %c0_i32 = arith.constant 0 : i32
    %c0_i32_0 = arith.constant 0 : i32
    return %arg0, %c0_i32 : i32, i32
  }
  func.func @transform_1(%arg0: i32) -> (i32, i32) {
    %c0_i32 = arith.constant 0 : i32
    %c0_i32_0 = arith.constant 0 : i32
    return %arg0, %c0_i32 : i32, i32
  }
  func.func @transform_2(%arg0: i32) -> (i32, i32) {
    %c0_i32 = arith.constant 0 : i32
    %c0_i32_0 = arith.constant 0 : i32
    return %arg0, %c0_i32 : i32, i32
  }
  func.func @transform_3(%arg0: i32) -> (i32, i32) {
    %c0_i32 = arith.constant 0 : i32
    %c0_i32_0 = arith.constant 0 : i32
    return %arg0, %c0_i32 : i32, i32
  }
}

</mosaic_0001>

<llo_original>
// kernel: tpu_custom_call.1
$region0: #{tpu_custom_call.1}
  #allocation0 [shape = 'u32[]', space=smem, size = 0x4, offset = 0x4, fixed_abs, tag = 'smem constant byte address 0x4 - core index']
  #allocation1 [shape = 'u32[72,128]{1,0:T(1,128)}', space=vmem, size = 0x9000, scoped, tag = 'internal scratch']
  %s0 = inlined_call_operand.hbm [shape: f32[8,32], index: 0, kind: input, shape index: {}]
  %s1 = inlined_call_operand.hbm [shape: f32[8,32], index: 1, kind: input, shape index: {}]
  %s2 = inlined_call_operand.vmem [shape: f32[8,1], index: 2, kind: output, shape index: {0}]
  %s3 = inlined_call_operand.vmem [shape: f32[8,1], index: 3, kind: output, shape index: {1}]
  %4 = xla_tuple %s2, %s3
  %s5 = sld [smem:[#allocation0]]
  $region34: #{tpu_custom_call.1} parent=0
    _
  %s7 = ssub.s32 1, %s5
  %s8 = scalar_select 0, %s7, %s5
  $region1: #{tpu_custom_call.1} parent=0
    #allocation2 [shape = 'u8[4096]{0}', space=vmem, size = 0x1000, scoped, tag = 'input window, operand 0, single buffered']
    #allocation3 [shape = 's32[1]{0}', space=sflag, size = 0x4, scoped, tag = 'scoped memory for tpu_custom_call.1']
    #allocation4 [shape = 'u8[4096]{0}', space=vmem, size = 0x1000, scoped, tag = 'input window, operand 1, single buffered']
    #allocation5 [shape = 's32[1]{0}', space=sflag, size = 0x4, scoped, tag = 'scoped memory for tpu_custom_call.1']
    %9 = vsyncpa [#allocation3], 0
    %10 = vsyncpa [#allocation5], 0
    // Predicated region
    $region2: #{tpu_custom_call.1} parent=1 // pred_check
      _
    $region3: #{tpu_custom_call.1} parent=1 // pred_check_branch
      %12 = sbr.rel (0) target = $region5
    $region4: #{tpu_custom_call.1} parent=1 // pred_region
      %14 = vsyncadd [#allocation3], 0
      %s16 = sshll.u32 %s0, 4
      %s17 = int_to_ptr.hbm [resolvable:$true] %s16
      %s18 = sshll.u32 [#allocation2], 4
      %s19 = int_to_ptr.vmem [resolvable:$true] %s18
      %21 = dma.hbm_to_vmem [thread:$0]  %s17, 128, %s19, [#allocation3]
    $region5: #{tpu_custom_call.1} parent=1 // pred_fallthru
      _
    // Predicated region
    $region6: #{tpu_custom_call.1} parent=1 // pred_check
      _
    $region7: #{tpu_custom_call.1} parent=1 // pred_check_branch
      %23 = sbr.rel (0) target = $region9
    $region8: #{tpu_custom_call.1} parent=1 // pred_region
      %25 = vsyncadd [#allocation5], 0
      %s27 = sshll.u32 %s1, 4
      %s28 = int_to_ptr.hbm [resolvable:$true] %s27
      %s29 = sshll.u32 [#allocation4], 4
      %s30 = int_to_ptr.vmem [resolvable:$true] %s29
      %32 = dma.hbm_to_vmem [thread:$0]  %s28, 128, %s30, [#allocation5]
    $region9: #{tpu_custom_call.1} parent=1 // pred_fallthru
      _
    // Predicated region
    $region10: #{tpu_custom_call.1} parent=1 // pred_check
      _
    $region11: #{tpu_custom_call.1} parent=1 // pred_check_branch
      %34 = sbr.rel (0) target = $region13
    $region12: #{tpu_custom_call.1} parent=1 // pred_region
      %36 = dma.done [#allocation3], 128
    $region13: #{tpu_custom_call.1} parent=1 // pred_fallthru
      _
    // Predicated region
    $region14: #{tpu_custom_call.1} parent=1 // pred_check
      _
    $region15: #{tpu_custom_call.1} parent=1 // pred_check_branch
      %38 = sbr.rel (0) target = $region17
    $region16: #{tpu_custom_call.1} parent=1 // pred_region
      %40 = dma.done [#allocation5], 128
    $region17: #{tpu_custom_call.1} parent=1 // pred_fallthru
      _
    %v41 = vld [vmem:[#allocation2] sm:$0xff]
    %v42 = vld [vmem:[#allocation4] sm:$0xff]
    %v43 = vsub.f32 %v41, %v42
    %v44 = vadd.f32 %v43, 1e-06
    %v45 = vmul.f32 %v44, %v44
    %vm46 = vcmask 261120
    %v47 = vsel %vm46, %v45, 0.0
    %48 = vadd.xlane.f32.xlu0 %v47
    %v49 = vpop.xlane.xlu0 %48
    %vm50 = vcmask 7168
    %51 = vst.msk [vmem:[%s2] sm:$0xff] %vm50, %v49
    %v52 = vand.u32 2147483647, %v41
    %v53 = vsel %vm46, %v52, 0.0
    %54 = vadd.xlane.f32.xlu0 %v53
    %v55 = vpop.xlane.xlu0 %54
    %v56 = vand.u32 2147483647, %v42
    %v57 = vsel %vm46, %v56, 0.0
    %58 = vadd.xlane.f32.xlu0 %v57
    %v59 = vpop.xlane.xlu0 %58
    %v60 = vadd.f32 %v55, %v59
    %61 = vst.msk [vmem:[%s3] sm:$0xff] %vm50, %v60
    // Predicated region
    $region18: #{tpu_custom_call.1} parent=1 // pred_check
      _
    $region19: #{tpu_custom_call.1} parent=1 // pred_check_branch
      %63 = sbr.rel (0) target = $region21
    $region20: #{tpu_custom_call.1} parent=1 // pred_region
      _
    $region21: #{tpu_custom_call.1} parent=1 // pred_fallthru
      _
    // Predicated region
    $region22: #{tpu_custom_call.1} parent=1 // pred_check
      _
    $region23: #{tpu_custom_call.1} parent=1 // pred_check_branch
      %65 = sbr.rel (0) target = $region25
    $region24: #{tpu_custom_call.1} parent=1 // pred_region
      _
    $region25: #{tpu_custom_call.1} parent=1 // pred_fallthru
      _
    // Predicated region
    $region26: #{tpu_custom_call.1} parent=1 // pred_check
      _
    $region27: #{tpu_custom_call.1} parent=1 // pred_check_branch
      %67 = sbr.rel (0) target = $region29
    $region28: #{tpu_custom_call.1} parent=1 // pred_region
      _
    $region29: #{tpu_custom_call.1} parent=1 // pred_fallthru
      _
    // Predicated region
    $region30: #{tpu_custom_call.1} parent=1 // pred_check
      _
    $region31: #{tpu_custom_call.1} parent=1 // pred_check_branch
      %69 = sbr.rel (0) target = $region33
    $region32: #{tpu_custom_call.1} parent=1 // pred_region
      _
    $region33: #{tpu_custom_call.1} parent=1 // pred_fallthru
      _
    %70 = vsyncpa [#allocation3], 1
    %71 = vsyncpa [#allocation5], 1

</llo_original>
